<compile_context>
chip_gen: v5e
topology: v5e:2x2
jax: 0.10.0
libtpu: 0.0.40
codegen_flags: <defaults>
</compile_context>

<pallas_src>
import functools
import math

import jax
import jax.numpy as jnp
import numpy as np
from jax import lax
from jax.experimental import pallas as pl
from jax.experimental.pallas import tpu as pltpu

# ---- hyperparameters (FastKANLayer defaults) ----
INPUT_DIM = 32
OUTPUT_DIM = 64
GRID_MIN = -2.0
GRID_MAX = 2.0
NUM_GRIDS = 8
LN_EPS = 1e-5
SPLINE_INIT_SCALE = 0.1

# RBF grid is a non-trainable linspace buffer -> bake as constants.
_GRID = np.linspace(GRID_MIN, GRID_MAX, NUM_GRIDS).astype(np.float32)
_DENOM = (GRID_MAX - GRID_MIN) / (NUM_GRIDS - 1)
_INV_DENOM = np.float32(1.0 / _DENOM)


def _round_up(a, b):
    return (a + b - 1) // b * b


def _default_bf16_exp():
    # v6e/v7x have a bf16 EUP/VPU; older generations do not, so keep
    # transcendental math in f32 there (bf16 would only add pack overhead).
    try:
        kind = jax.devices()[0].device_kind.lower()
    except Exception:
        return False
    return not any(v in kind for v in ("v2", "v3", "v4", "v5"))


def _fastkan_kernel(x_ref, gscale_ref, rep_ref, offs_ref, ws_ref, wb_ref,
                    bb_ref, out_ref, *, inner_rows, n_sub, bf16_exp, unroll):
    # x_ref:     [TN, D]   native dtype
    # gscale_ref:[1, D]    f32   gamma[d] / denom
    # rep_ref:   [D, D*G]  bf16  exact 0/1 one-hot placement (col = g*D + d)
    # offs_ref:  [1, D*G]  f32   (beta[d] - grid[g]) / denom
    # ws_ref:    [D*G, O]  bf16  spline weight (rows in g*D+d order)
    # wb_ref:    [D, O]    bf16  base weight
    # bb_ref:    [1, O]    f32   base bias
    # out_ref:   [TN, O]   f32

    # Hoist all loop-invariant reads: JAX does not CSE them, and re-reading
    # per chunk re-issues the weight vlds every iteration.
    gscale = gscale_ref[...]
    offs = offs_ref[...]
    rep = rep_ref[...]
    ws = ws_ref[...]
    wb = wb_ref[...]
    bb = bb_ref[...]

    def body(r, carry):
        lo = pl.multiple_of(r * inner_rows, inner_rows)
        x = x_ref[pl.ds(lo, inner_rows), :].astype(jnp.float32)

        # ---- LayerNorm stats in one pass (biased variance, like nn.LayerNorm)
        mean = jnp.mean(x, axis=-1, keepdims=True)
        msq = jnp.mean(x * x, axis=-1, keepdims=True)
        var = jnp.maximum(msq - mean * mean, 0.0)
        yn = (x - mean) * lax.rsqrt(var + LN_EPS)                 # [IR, D]

        # ---- Lane-dense RBF argument:
        #   t[:, g*D+d] = yn[:, d]*gamma[d]/denom + (beta[d] - grid[g])/denom
        # Replication is a single bf16 MXU pass against an exact 0/1 matrix
        # (one nonzero per column, f32 accumulation), so the only matmul
        # error is the bf16 rounding of the scaled LHS.
        lhs = (yn * gscale).astype(jnp.bfloat16)                  # [IR, D]
        t = jnp.dot(lhs, rep, preferred_element_type=jnp.float32) + offs

        if bf16_exp:
            # bf16 EUP exp; basis lands already in the matmul operand dtype.
            basis = jnp.exp((-(t * t)).astype(jnp.bfloat16))      # [IR, D*G]
        else:
            basis = jnp.exp(-(t * t)).astype(jnp.bfloat16)

        # ---- Base path activation (f32 math, bf16 matmul operand) ----
        silu_x = (x * jax.nn.sigmoid(x)).astype(jnp.bfloat16)     # [IR, D]

        # ---- Fused spline matmul (K = D*G = 256) + small base matmul ----
        acc = jnp.dot(basis, ws, preferred_element_type=jnp.float32)
        acc = acc + jnp.dot(silu_x, wb, preferred_element_type=jnp.float32)
        out_ref[pl.ds(lo, inner_rows), :] = (acc + bb).astype(out_ref.dtype)
        return carry

    lax.fori_loop(0, n_sub, body, 0, unroll=unroll)


def fastkan_layer(x, ln_gamma, ln_beta, spline_weight, base_weight, base_bias,
                  *, row_tile=8192, inner_rows=128, bf16_exp=None):
    """x: [..., INPUT_DIM] -> [..., OUTPUT_DIM].

    spline_weight: [OUTPUT_DIM, INPUT_DIM * NUM_GRIDS]  (PyTorch Linear layout)
    base_weight:   [OUTPUT_DIM, INPUT_DIM]
    base_bias:     [OUTPUT_DIM]
    """
    lead = x.shape[:-1]
    d = x.shape[-1]
    assert d == INPUT_DIM
    dg = d * NUM_GRIDS
    n = int(np.prod(lead)) if lead else 1
    x2 = x.reshape(n, d)          # keep native dtype: no wrapper upcast

    if bf16_exp is None:
        bf16_exp = _default_bf16_exp()

    # Per-feature LN scale folded with 1/denom (applied in f32 on the VPU).
    gscale = (ln_gamma.astype(jnp.float32) * _INV_DENOM).reshape(1, d)

    # Exact 0/1 one-hot placement matrix (g-major lane order: col = g*D + d).
    # 0/1 are exact in bf16, so the replication dot adds no weight error.
    rep = jnp.tile(jnp.eye(d, dtype=jnp.float32),
                   (1, NUM_GRIDS)).astype(jnp.bfloat16)            # [D, D*G]

    # Per-lane offset: (beta[d] - grid[g]) / denom  (lane index = g*D + d).
    beta_rep = jnp.tile(ln_beta.astype(jnp.float32) * _INV_DENOM, (NUM_GRIDS,))
    grid_rep = jnp.repeat(jnp.asarray(_GRID) * _INV_DENOM, d)
    offs = (beta_rep - grid_rep).reshape(1, dg)

    # PyTorch flatten order of the RBF output is index = d*G + g, so
    # W.reshape(O, D, G)[o, d, g] is the coefficient for feature d, node g.
    # Re-order rows to the kernel's g-major lane order (row = g*D + d).
    ws = jnp.transpose(spline_weight.reshape(OUTPUT_DIM, d, NUM_GRIDS),
                       (2, 1, 0)).reshape(dg, OUTPUT_DIM).astype(jnp.bfloat16)
    wb = jnp.transpose(base_weight).astype(jnp.bfloat16)           # [D, O]
    bb = base_bias.reshape(1, OUTPUT_DIM).astype(jnp.float32)

    # ---- tiling: big row tiles, padded row count (no divisibility assert) ----
    row_tile = _round_up(max(8, min(int(row_tile), _round_up(n, 8))), 8)
    inner = _round_up(max(8, min(int(inner_rows), row_tile)), 8)
    row_tile = _round_up(row_tile, inner)
    # Prefer >= 2 grid steps when there is enough work so the v7x megacore
    # (2 TensorCores) can shard the single "parallel" axis; no-op on v5e/v6e.
    n_pad_inner = _round_up(n, inner)
    if n_pad_inner >= 2 * inner:
        half = _round_up((n_pad_inner + 1) // 2, inner)
        row_tile = min(row_tile, half)
    n_pad = _round_up(n, row_tile)
    if n_pad != n:
        x2 = jnp.pad(x2, ((0, n_pad - n), (0, 0)))
    grid = (n_pad // row_tile,)

    n_sub = row_tile // inner
    unroll = 4 if n_sub % 4 == 0 else (2 if n_sub % 2 == 0 else 1)
    unroll = max(1, min(unroll, n_sub))

    kernel = functools.partial(_fastkan_kernel, inner_rows=inner, n_sub=n_sub,
                               bf16_exp=bool(bf16_exp), unroll=unroll)
    out = pl.pallas_call(
        kernel,
        out_shape=jax.ShapeDtypeStruct((n_pad, OUTPUT_DIM), jnp.float32),
        grid_spec=pltpu.PrefetchScalarGridSpec(
            num_scalar_prefetch=0,
            grid=grid,
            in_specs=[
                pl.BlockSpec((row_tile, d), lambda i: (i, 0)),        # x rows
                pl.BlockSpec((1, d), lambda i: (0, 0)),               # gamma/denom
                pl.BlockSpec((d, dg), lambda i: (0, 0)),              # one-hot rep (bf16)
                pl.BlockSpec((1, dg), lambda i: (0, 0)),              # beta/grid offs
                pl.BlockSpec((dg, OUTPUT_DIM), lambda i: (0, 0)),     # spline W (bf16)
                pl.BlockSpec((d, OUTPUT_DIM), lambda i: (0, 0)),      # base W (bf16)
                pl.BlockSpec((1, OUTPUT_DIM), lambda i: (0, 0)),      # base bias
            ],
            out_specs=pl.BlockSpec((row_tile, OUTPUT_DIM), lambda i: (i, 0)),
        ),
        compiler_params=pltpu.CompilerParams(
            dimension_semantics=("parallel",)),
    )(x2, gscale, rep, offs, ws, wb, bb)

    return out[:n].reshape(*lead, OUTPUT_DIM)


def _reference(x, ln_gamma, ln_beta, spline_weight, base_weight, base_bias):
    """Plain-JAX (f32) replica of the PyTorch forward, for verification."""
    mean = jnp.mean(x, axis=-1, keepdims=True)
    var = jnp.mean(jnp.square(x - mean), axis=-1, keepdims=True)
    y = (x - mean) / jnp.sqrt(var + LN_EPS) * ln_gamma + ln_beta
    basis = jnp.exp(-jnp.square((y[..., None] - jnp.asarray(_GRID)) / _DENOM))
    flat = basis.reshape(*basis.shape[:-2], -1)                # [.., D*G]
    ret = flat @ spline_weight.T
    base = jax.nn.silu(x) @ base_weight.T + base_bias
    return ret + base


if __name__ == "__main__":
    key = jax.random.PRNGKey(0)
    kx, ks, kbw, kbb = jax.random.split(key, 4)

    # Input: [batch, seq, input_dim].
    x = jax.random.normal(kx, (2, 8, INPUT_DIM), dtype=jnp.float32)

    # LayerNorm params (default init: gamma=1, beta=0).
    ln_gamma = jnp.ones((INPUT_DIM,), jnp.float32)
    ln_beta = jnp.zeros((INPUT_DIM,), jnp.float32)

    # SplineLinear: trunc_normal(std=0.1), bias=False.
    spline_weight = (SPLINE_INIT_SCALE *
                     jax.random.truncated_normal(
                         ks, -2.0, 2.0,
                         (OUTPUT_DIM, INPUT_DIM * NUM_GRIDS), jnp.float32))

    # base_linear: nn.Linear default init bounds, with bias.
    bound_w = 1.0 / math.sqrt(INPUT_DIM)
    base_weight = jax.random.uniform(kbw, (OUTPUT_DIM, INPUT_DIM),
                                     jnp.float32, -bound_w, bound_w)
    base_bias = jax.random.uniform(kbb, (OUTPUT_DIM,),
                                   jnp.float32, -bound_w, bound_w)

    out = fastkan_layer(x, ln_gamma, ln_beta, spline_weight,
                        base_weight, base_bias)
    out = jax.block_until_ready(out)

    ref = _reference(x, ln_gamma, ln_beta, spline_weight,
                     base_weight, base_bias)
    # bf16 MXU operands + (on v6e/v7x) bf16 exp, with f32 accumulation ->
    # tolerance intentionally loosened per the performance review.
    np.testing.assert_allclose(np.asarray(out), np.asarray(ref),
                               rtol=3e-2, atol=3e-2)
    assert out.shape == (2, 8, OUTPUT_DIM)
    print("KERNEL_OK")
</pallas_src>

<mosaic_0001>
module attributes {stable_mosaic.version = 11 : i64} {
  func.func @_fastkan_kernel(%arg0: i32, %arg1: memref<16x32xf32, #tpu.memory_space<vmem>>, %arg2: memref<1x32xf32, #tpu.memory_space<vmem>>, %arg3: memref<32x256xbf16, #tpu.memory_space<vmem>>, %arg4: memref<1x256xf32, #tpu.memory_space<vmem>>, %arg5: memref<256x64xbf16, #tpu.memory_space<vmem>>, %arg6: memref<32x64xbf16, #tpu.memory_space<vmem>>, %arg7: memref<1x64xf32, #tpu.memory_space<vmem>>, %arg8: memref<16x64xf32, #tpu.memory_space<vmem>>) attributes {dimension_semantics = [#tpu.dimension_semantics<parallel>], iteration_bounds = array<i64: 1>, scalar_prefetch = 0 : i64, scratch_operands = 0 : i64, tpu.core_type = #tpu.core_type<tc>, window_params = [{transform_indices = @transform_0, window_bounds = array<i64: 16, 32>}, {pipeline_mode = #tpu.pipeline_mode<synchronous>, transform_indices = @transform_1, window_bounds = array<i64: 1, 32>}, {pipeline_mode = #tpu.pipeline_mode<synchronous>, transform_indices = @transform_2, window_bounds = array<i64: 32, 256>}, {pipeline_mode = #tpu.pipeline_mode<synchronous>, transform_indices = @transform_3, window_bounds = array<i64: 1, 256>}, {pipeline_mode = #tpu.pipeline_mode<synchronous>, transform_indices = @transform_4, window_bounds = array<i64: 256, 64>}, {pipeline_mode = #tpu.pipeline_mode<synchronous>, transform_indices = @transform_5, window_bounds = array<i64: 32, 64>}, {pipeline_mode = #tpu.pipeline_mode<synchronous>, transform_indices = @transform_6, window_bounds = array<i64: 1, 64>}, {transform_indices = @transform_7, window_bounds = array<i64: 16, 64>}]} {
    %c0 = arith.constant 0 : index
    %c0_0 = arith.constant 0 : index
    %0 = vector.load %arg2[%c0, %c0_0] : memref<1x32xf32, #tpu.memory_space<vmem>>, vector<1x32xf32>
    %c0_1 = arith.constant 0 : index
    %c0_2 = arith.constant 0 : index
    %1 = vector.load %arg4[%c0_1, %c0_2] : memref<1x256xf32, #tpu.memory_space<vmem>>, vector<1x256xf32>
    %c0_3 = arith.constant 0 : index
    %c0_4 = arith.constant 0 : index
    %2 = vector.load %arg3[%c0_3, %c0_4] : memref<32x256xbf16, #tpu.memory_space<vmem>>, vector<32x256xbf16>
    %c0_5 = arith.constant 0 : index
    %c0_6 = arith.constant 0 : index
    %3 = vector.load %arg5[%c0_5, %c0_6] : memref<256x64xbf16, #tpu.memory_space<vmem>>, vector<256x64xbf16>
    %c0_7 = arith.constant 0 : index
    %c0_8 = arith.constant 0 : index
    %4 = vector.load %arg6[%c0_7, %c0_8] : memref<32x64xbf16, #tpu.memory_space<vmem>>, vector<32x64xbf16>
    %c0_9 = arith.constant 0 : index
    %c0_10 = arith.constant 0 : index
    %5 = vector.load %arg7[%c0_9, %c0_10] : memref<1x64xf32, #tpu.memory_space<vmem>>, vector<1x64xf32>
    %c0_i32 = arith.constant 0 : i32
    %c16_i32 = arith.constant 16 : i32
    %6 = arith.muli %c0_i32, %c16_i32 : i32
    %7 = tpu.assume_multiple %6, 16 : i32
    %8 = arith.index_cast %7 : i32 to index
    %c0_11 = arith.constant 0 : index
    %9 = vector.load %arg1[%8, %c0_11] : memref<16x32xf32, #tpu.memory_space<vmem>>, vector<16x32xf32>
    %cst = arith.constant dense<0.000000e+00> : vector<16xf32>
    %10 = vector.multi_reduction <add>, %9, %cst [1] : vector<16x32xf32> to vector<16xf32>
    %11 = vector.shape_cast %10 : vector<16xf32> to vector<16x1xf32>
    %cst_12 = arith.constant 3.200000e+01 : f32
    %12 = vector.broadcast %cst_12 : f32 to vector<16x1xf32>
    %13 = arith.divf %11, %12 : vector<16x1xf32>
    %14 = arith.mulf %9, %9 : vector<16x32xf32>
    %cst_13 = arith.constant dense<0.000000e+00> : vector<16xf32>
    %15 = vector.multi_reduction <add>, %14, %cst_13 [1] : vector<16x32xf32> to vector<16xf32>
    %16 = vector.shape_cast %15 : vector<16xf32> to vector<16x1xf32>
    %cst_14 = arith.constant 3.200000e+01 : f32
    %17 = vector.broadcast %cst_14 : f32 to vector<16x1xf32>
    %18 = arith.divf %16, %17 : vector<16x1xf32>
    %19 = arith.mulf %13, %13 : vector<16x1xf32>
    %20 = arith.subf %18, %19 : vector<16x1xf32>
    %cst_15 = arith.constant 0.000000e+00 : f32
    %21 = vector.broadcast %cst_15 : f32 to vector<16x1xf32>
    %22 = arith.maximumf %20, %21 : vector<16x1xf32>
    %23 = vector.broadcast %13 : vector<16x1xf32> to vector<16x32xf32>
    %24 = arith.subf %9, %23 : vector<16x32xf32>
    %cst_16 = arith.constant 9.99999974E-6 : f32
    %25 = vector.broadcast %cst_16 : f32 to vector<16x1xf32>
    %26 = arith.addf %22, %25 : vector<16x1xf32>
    %27 = math.rsqrt %26 : vector<16x1xf32>
    %28 = vector.broadcast %27 : vector<16x1xf32> to vector<16x32xf32>
    %29 = arith.mulf %24, %28 : vector<16x32xf32>
    %30 = vector.broadcast %0 : vector<1x32xf32> to vector<16x32xf32>
    %31 = arith.mulf %29, %30 : vector<16x32xf32>
    %32 = arith.truncf %31 : vector<16x32xf32> to vector<16x32xbf16>
    %cst_17 = arith.constant dense<0.000000e+00> : vector<16x256xf32>
    %33 = tpu.matmul %32, %2, %cst_17 {dimension_numbers = #tpu.dot_dimension_numbers<[1], [0], [0], [1], [0, 0, 1, 1], [], []>} : vector<16x32xbf16>, vector<32x256xbf16>, vector<16x256xf32> -> vector<16x256xf32>
    %34 = vector.broadcast %1 : vector<1x256xf32> to vector<16x256xf32>
    %35 = arith.addf %33, %34 : vector<16x256xf32>
    %36 = arith.mulf %35, %35 : vector<16x256xf32>
    %cst_18 = arith.constant 0.000000e+00 : f32
    %37 = vector.broadcast %cst_18 : f32 to vector<16x256xf32>
    %38 = arith.subf %37, %36 : vector<16x256xf32>
    %39 = arith.truncf %38 : vector<16x256xf32> to vector<16x256xbf16>
    %40 = math.exp %39 : vector<16x256xbf16>
    %41 = arith.negf %9 : vector<16x32xf32>
    %42 = math.exp %41 : vector<16x32xf32>
    %cst_19 = arith.constant 1.000000e+00 : f32
    %43 = vector.broadcast %cst_19 : f32 to vector<16x32xf32>
    %44 = arith.addf %43, %42 : vector<16x32xf32>
    %45 = arith.divf %43, %44 : vector<16x32xf32>
    %46 = arith.mulf %9, %45 : vector<16x32xf32>
    %47 = arith.truncf %46 : vector<16x32xf32> to vector<16x32xbf16>
    %cst_20 = arith.constant dense<0.000000e+00> : vector<16x64xf32>
    %48 = tpu.matmul %40, %3, %cst_20 {dimension_numbers = #tpu.dot_dimension_numbers<[1], [0], [0], [1], [0, 0, 1, 1], [], []>} : vector<16x256xbf16>, vector<256x64xbf16>, vector<16x64xf32> -> vector<16x64xf32>
    %cst_21 = arith.constant dense<0.000000e+00> : vector<16x64xf32>
    %49 = tpu.matmul %47, %4, %cst_21 {dimension_numbers = #tpu.dot_dimension_numbers<[1], [0], [0], [1], [0, 0, 1, 1], [], []>} : vector<16x32xbf16>, vector<32x64xbf16>, vector<16x64xf32> -> vector<16x64xf32>
    %50 = arith.addf %48, %49 : vector<16x64xf32>
    %51 = vector.broadcast %5 : vector<1x64xf32> to vector<16x64xf32>
    %52 = arith.addf %50, %51 : vector<16x64xf32>
    %53 = arith.index_cast %7 : i32 to index
    %c0_22 = arith.constant 0 : index
    %54 = vector.load %arg8[%53, %c0_22] : memref<16x64xf32, #tpu.memory_space<vmem>>, vector<16x64xf32>
    tpu.vector_store %arg8[%53, %c0_22], %52 {strides = array<i32>} : memref<16x64xf32, #tpu.memory_space<vmem>>, vector<16x64xf32>,
    %c1_i32 = arith.constant 1 : i32
    return
  }
  func.func @transform_0(%arg0: i32) -> (i32, i32) {
    %c0_i32 = arith.constant 0 : i32
    %c0_i32_0 = arith.constant 0 : i32
    return %arg0, %c0_i32 : i32, i32
  }
  func.func @transform_1(%arg0: i32) -> (i32, i32) {
    %c0_i32 = arith.constant 0 : i32
    %c0_i32_0 = arith.constant 0 : i32
    %c0_i32_1 = arith.constant 0 : i32
    return %c0_i32, %c0_i32_0 : i32, i32
  }
  func.func @transform_2(%arg0: i32) -> (i32, i32) {
    %c0_i32 = arith.constant 0 : i32
    %c0_i32_0 = arith.constant 0 : i32
    %c0_i32_1 = arith.constant 0 : i32
    return %c0_i32, %c0_i32_0 : i32, i32
  }
  func.func @transform_3(%arg0: i32) -> (i32, i32) {
    %c0_i32 = arith.constant 0 : i32
    %c0_i32_0 = arith.constant 0 : i32
    %c0_i32_1 = arith.constant 0 : i32
    return %c0_i32, %c0_i32_0 : i32, i32
  }
  func.func @transform_4(%arg0: i32) -> (i32, i32) {
    %c0_i32 = arith.constant 0 : i32
    %c0_i32_0 = arith.constant 0 : i32
    %c0_i32_1 = arith.constant 0 : i32
    return %c0_i32, %c0_i32_0 : i32, i32
  }
  func.func @transform_5(%arg0: i32) -> (i32, i32) {
    %c0_i32 = arith.constant 0 : i32
    %c0_i32_0 = arith.constant 0 : i32
    %c0_i32_1 = arith.constant 0 : i32
    return %c0_i32, %c0_i32_0 : i32, i32
  }
  func.func @transform_6(%arg0: i32) -> (i32, i32) {
    %c0_i32 = arith.constant 0 : i32
    %c0_i32_0 = arith.constant 0 : i32
    %c0_i32_1 = arith.constant 0 : i32
    return %c0_i32, %c0_i32_0 : i32, i32
  }
  func.func @transform_7(%arg0: i32) -> (i32, i32) {
    %c0_i32 = arith.constant 0 : i32
    %c0_i32_0 = arith.constant 0 : i32
    return %arg0, %c0_i32 : i32, i32
  }
}

</mosaic_0001>

<llo_original>
// kernel: tpu_custom_call.1
$region0: #{tpu_custom_call.1}
  #allocation0 [shape = 'u32[]', space=smem, size = 0x4, offset = 0x4, fixed_abs, tag = 'smem constant byte address 0x4 - core index']
  #allocation1 [shape = 'u32[72,128]{1,0:T(1,128)}', space=vmem, size = 0x9000, scoped, tag = 'internal scratch']
  %s0 = inlined_call_operand.vmem [shape: f32[16,32], index: 0, kind: input, shape index: {}]
  %s1 = inlined_call_operand.vmem [shape: f32[1,32], index: 1, kind: input, shape index: {}]
  %s2 = inlined_call_operand.vmem [shape: bf16[32,256], index: 2, kind: input, shape index: {}]
  %s3 = inlined_call_operand.vmem [shape: f32[1,256], index: 3, kind: input, shape index: {}]
  %s4 = inlined_call_operand.vmem [shape: bf16[256,64], index: 4, kind: input, shape index: {}]
  %s5 = inlined_call_operand.vmem [shape: bf16[32,64], index: 5, kind: input, shape index: {}]
  %s6 = inlined_call_operand.vmem [shape: f32[1,64], index: 6, kind: input, shape index: {}]
  %s7 = inlined_call_operand.hbm [shape: f32[16,64], index: 7, kind: output, shape index: {}]
  %s8 = sld [smem:[#allocation0]]
  $region38: #{tpu_custom_call.1} parent=0
    _
  %s10 = ssub.s32 1, %s8
  %s11 = scalar_select 0, %s10, %s8
  $region1: #{tpu_custom_call.1} parent=0
    #allocation2 [shape = 'u8[8192]{0}', space=vmem, size = 0x2000, scoped, tag = 'output window, operand 0, single buffered']
    #allocation3 [shape = 's32[1]{0}', space=sflag, size = 0x4, scoped, tag = 'scoped memory for tpu_custom_call.1']
    %12 = vsyncpa [#allocation3], 0
    // Predicated region
    $region2: #{tpu_custom_call.1} parent=1 // pred_check
      _
    $region3: #{tpu_custom_call.1} parent=1 // pred_check_branch
      %14 = sbr.rel (0) target = $region5
    $region4: #{tpu_custom_call.1} parent=1 // pred_region
      _
    $region5: #{tpu_custom_call.1} parent=1 // pred_fallthru
      _
    // Predicated region
    $region6: #{tpu_custom_call.1} parent=1 // pred_check
      _
    $region7: #{tpu_custom_call.1} parent=1 // pred_check_branch
      %16 = sbr.rel (0) target = $region9
    $region8: #{tpu_custom_call.1} parent=1 // pred_region
      _
    $region9: #{tpu_custom_call.1} parent=1 // pred_fallthru
      _
    // Predicated region
    $region10: #{tpu_custom_call.1} parent=1 // pred_check
      _
    $region11: #{tpu_custom_call.1} parent=1 // pred_check_branch
      %18 = sbr.rel (0) target = $region13
    $region12: #{tpu_custom_call.1} parent=1 // pred_region
      _
    $region13: #{tpu_custom_call.1} parent=1 // pred_fallthru
      _
    // Predicated region
    $region14: #{tpu_custom_call.1} parent=1 // pred_check
      _
    $region15: #{tpu_custom_call.1} parent=1 // pred_check_branch
      %20 = sbr.rel (0) target = $region17
    $region16: #{tpu_custom_call.1} parent=1 // pred_region
      _
    $region17: #{tpu_custom_call.1} parent=1 // pred_fallthru
      _
    // Predicated region
    $region18: #{tpu_custom_call.1} parent=1 // pred_check
      _
    $region19: #{tpu_custom_call.1} parent=1 // pred_check_branch
      %22 = sbr.rel (0) target = $region21
    $region20: #{tpu_custom_call.1} parent=1 // pred_region
      _
    $region21: #{tpu_custom_call.1} parent=1 // pred_fallthru
      _
    // Predicated region
    $region22: #{tpu_custom_call.1} parent=1 // pred_check
      _
    $region23: #{tpu_custom_call.1} parent=1 // pred_check_branch
      %24 = sbr.rel (0) target = $region25
    $region24: #{tpu_custom_call.1} parent=1 // pred_region
      _
    $region25: #{tpu_custom_call.1} parent=1 // pred_fallthru
      _
    // Predicated region
    $region26: #{tpu_custom_call.1} parent=1 // pred_check
      _
    $region27: #{tpu_custom_call.1} parent=1 // pred_check_branch
      %26 = sbr.rel (0) target = $region29
    $region28: #{tpu_custom_call.1} parent=1 // pred_region
      _
    $region29: #{tpu_custom_call.1} parent=1 // pred_fallthru
      _
    %v28 = vld [vmem:[%s1] sm:$0x1]
    %v29 = vld [vmem:[%s3] sm:$0x3]
    %v30 = vld [vmem:[%s2] sm:$0xff]
    %v31 = vld [vmem:[%s2 + $0x8] sm:$0xff]
    %v32 = vld [vmem:[%s2 + $0x10] sm:$0xff]
    %v33 = vld [vmem:[%s2 + $0x18] sm:$0xff]
    %v34 = vld [vmem:[%s4] sm:$0xf]
    %v35 = vld [vmem:[%s4 + $0x4] sm:$0xf]
    %v36 = vld [vmem:[%s4 + $0x8] sm:$0xf]
    %v37 = vld [vmem:[%s4 + $0xc] sm:$0xf]
    %v38 = vld [vmem:[%s4 + $0x10] sm:$0xf]
    %v39 = vld [vmem:[%s4 + $0x14] sm:$0xf]
    %v40 = vld [vmem:[%s4 + $0x18] sm:$0xf]
    %v41 = vld [vmem:[%s4 + $0x1c] sm:$0xf]
    %v42 = vld [vmem:[%s4 + $0x20] sm:$0xf]
    %v43 = vld [vmem:[%s4 + $0x24] sm:$0xf]
    %v44 = vld [vmem:[%s4 + $0x28] sm:$0xf]
    %v45 = vld [vmem:[%s4 + $0x2c] sm:$0xf]
    %v46 = vld [vmem:[%s4 + $0x30] sm:$0xf]
    %v47 = vld [vmem:[%s4 + $0x34] sm:$0xf]
    %v48 = vld [vmem:[%s4 + $0x38] sm:$0xf]
    %v49 = vld [vmem:[%s4 + $0x3c] sm:$0xf]
    %v50 = vld [vmem:[%s4 + $0x40] sm:$0xf]
    %v51 = vld [vmem:[%s4 + $0x44] sm:$0xf]
    %v52 = vld [vmem:[%s4 + $0x48] sm:$0xf]
    %v53 = vld [vmem:[%s4 + $0x4c] sm:$0xf]
    %v54 = vld [vmem:[%s4 + $0x50] sm:$0xf]
    %v55 = vld [vmem:[%s4 + $0x54] sm:$0xf]
    %v56 = vld [vmem:[%s4 + $0x58] sm:$0xf]
    %v57 = vld [vmem:[%s4 + $0x5c] sm:$0xf]
    %v58 = vld [vmem:[%s4 + $0x60] sm:$0xf]
    %v59 = vld [vmem:[%s4 + $0x64] sm:$0xf]
    %v60 = vld [vmem:[%s4 + $0x68] sm:$0xf]
    %v61 = vld [vmem:[%s4 + $0x6c] sm:$0xf]
    %v62 = vld [vmem:[%s4 + $0x70] sm:$0xf]
    %v63 = vld [vmem:[%s4 + $0x74] sm:$0xf]
    %v64 = vld [vmem:[%s4 + $0x78] sm:$0xf]
    %v65 = vld [vmem:[%s4 + $0x7c] sm:$0xf]
    %v66 = vld [vmem:[%s5] sm:$0xf]
    %v67 = vld [vmem:[%s5 + $0x4] sm:$0xf]
    %v68 = vld [vmem:[%s5 + $0x8] sm:$0xf]
    %v69 = vld [vmem:[%s5 + $0xc] sm:$0xf]
    %v70 = vld [vmem:[%s6] sm:$0x1]
    %v71 = vld [vmem:[%s0] sm:$0xff]
    %v72 = vld [vmem:[%s0 + $0x8] sm:$0xff]
    %vm73 = vcmask 261120
    %v74 = vsel %vm73, %v71, 0.0
    %75 = vadd.xlane.f32.xlu0 %v74
    %v76 = vpop.xlane.xlu0 %75
    %v77 = vsel %vm73, %v72, 0.0
    %78 = vadd.xlane.f32.xlu0 %v77
    %v79 = vpop.xlane.xlu0 %78
    %v80 = vrcp.pop 32.0
    %v81 = vmul.f32 32.0, %v80
    %v82 = vsub.f32 1.0, %v81
    %v83 = vmul.f32 %v80, %v82
    %v84 = vadd.f32 %v80, %v83
    %vm85 = vweird.f32 %v80
    %v86 = vsel %vm85, %v80, %v84
    %v87 = vmul.f32 %v76, %v86
    %v88 = vmul.f32 %v79, %v86
    %v89 = vmul.f32 %v71, %v71
    %v90 = vmul.f32 %v72, %v72
    %v91 = vsel %vm73, %v89, 0.0
    %92 = vadd.xlane.f32.xlu0 %v91
    %v93 = vpop.xlane.xlu0 %92
    %v94 = vsel %vm73, %v90, 0.0
    %95 = vadd.xlane.f32.xlu0 %v94
    %v96 = vpop.xlane.xlu0 %95
    %v97 = vmul.f32 %v93, %v86
    %v98 = vmul.f32 %v96, %v86
    %v99 = vmul.f32 %v87, %v87
    %v100 = vmul.f32 %v88, %v88
    %v101 = vsub.f32 %v97, %v99
    %v102 = vsub.f32 %v98, %v100
    %v103 = vmax.f32 %v101, 0.0
    %v104 = vmax.f32 %v102, 0.0
    %v105 = vsub.f32 %v71, %v87
    %v106 = vsub.f32 %v72, %v88
    %v107 = vadd.f32 %v103, 1e-05
    %v108 = vadd.f32 %v104, 1e-05
    %v109 = vrsqrt.pop %v107
    %v110 = vmul.f32 %v109, %v107
    %v111 = vmul.f32 %v110, %v109
    %v112 = vmul.f32 0.5, %v111
    %v113 = vsub.f32 1.5, %v112
    %v114 = vmul.f32 %v109, %v113
    %vm115 = vweird.f32 %v107
    %vm116 = vweird.f32 %v109
    %vm117 = vmor %vm115, %vm116
    %v118 = vsel %vm117, %v109, %v114
    %v119 = vrsqrt.pop %v108
    %v120 = vmul.f32 %v119, %v108
    %v121 = vmul.f32 %v120, %v119
    %v122 = vmul.f32 0.5, %v121
    %v123 = vsub.f32 1.5, %v122
    %v124 = vmul.f32 %v119, %v123
    %vm125 = vweird.f32 %v108
    %vm126 = vweird.f32 %v119
    %vm127 = vmor %vm125, %vm126
    %v128 = vsel %vm127, %v119, %v124
    %v129 = vmul.f32 %v105, %v118
    %v130 = vmul.f32 %v106, %v128
    %v132 = vperm.slane %v28, 0
    %v134 = vmul.f32 %v129, %v132
    %v135 = vmul.f32 %v130, %v132
    %v136 = vpack.c.bf16 %v135, %v134
    %v138 = vperm.slane %v29, 0
    %v139 = vperm.slane %v29, 1
    %v146 = vunpack.c.l.b16 %v30
    %v147 = vunpack.c.h.b16 %v30
    %v148 = vunpack.c.l.b16 %v31
    %v149 = vunpack.c.h.b16 %v31
    %v150 = vunpack.c.l.b16 %v32
    %v151 = vunpack.c.h.b16 %v32
    %v152 = vunpack.c.l.b16 %v33
    %v153 = vunpack.c.h.b16 %v33
    %v154 = vpack.c.b16 %v148, %v146
    %v155 = vpack.c.b16 %v149, %v147
    %v156 = vpack.c.b16 %v152, %v150
    %v157 = vpack.c.b16 %v153, %v151
    %v163 = vsel %vm73, %v136, 0
    %165 = vmatpush.bf16.msra.mxu0 0
    %166 = vmatpush.bf16.msra.mxu0 0
    %167 = vmatpush.bf16.msra.mxu0 0
    %168 = vmatpush.bf16.msra.mxu0 0
    %169 = vmatpush.bf16.msra.mxu0 0
    %170 = vmatpush.bf16.msra.mxu0 0
    %171 = vmatpush.bf16.msra.mxu0 %v156
    %172 = vmatpush.bf16.msra.mxu0 %v154
    %173 = vmatmul.bf16.gmra.mxu0 %v163
    %v174 = vpop.f32.mrf.mxu0
    %v175 = vadd.f32 %v138, %v174
    %v176 = vpop.f32.mrf.mxu0
    %v177 = vadd.f32 %v138, %v176
    %178 = vdwg.mxu0
    %179 = vmatpush.bf16.msra.mxu0 0
    %180 = vmatpush.bf16.msra.mxu0 0
    %181 = vmatpush.bf16.msra.mxu0 0
    %182 = vmatpush.bf16.msra.mxu0 0
    %183 = vmatpush.bf16.msra.mxu0 0
    %184 = vmatpush.bf16.msra.mxu0 0
    %185 = vmatpush.bf16.msra.mxu0 %v157
    %186 = vmatpush.bf16.msra.mxu0 %v155
    %187 = vmatmul.bf16.gmra.mxu0 %v163
    %v188 = vpop.f32.mrf.mxu0
    %v189 = vadd.f32 %v139, %v188
    %v190 = vpop.f32.mrf.mxu0
    %v191 = vadd.f32 %v139, %v190
    %192 = vdwg.mxu0
    %v193 = vmul.f32 %v175, %v175
    %v194 = vmul.f32 %v189, %v189
    %v195 = vmul.f32 %v177, %v177
    %v196 = vmul.f32 %v191, %v191
    %v197 = vsub.f32 0.0, %v193
    %v198 = vsub.f32 0.0, %v194
    %v199 = vsub.f32 0.0, %v195
    %v200 = vsub.f32 0.0, %v196
    %v201 = vpack.c.bf16 %v199, %v197
    %v202 = vpack.c.bf16 %v200, %v198
    %v203 = vunpack.c.l.bf16 %v201
    %v204 = vunpack.c.l.bf16 %v202
    %v205 = vunpack.c.h.bf16 %v201
    %v206 = vunpack.c.h.bf16 %v202
    %v207 = vmul.f32 %v203, 1.442695
    %v208 = vpow.pop %v207
    %v209 = vmul.f32 %v204, 1.442695
    %v210 = vpow.pop %v209
    %v211 = vmul.f32 %v205, 1.442695
    %v212 = vpow.pop %v211
    %v213 = vmul.f32 %v206, 1.442695
    %v214 = vpow.pop %v213
    %v215 = vpack.c.bf16 %v212, %v208
    %v216 = vpack.c.bf16 %v214, %v210
    %v217 = vxor.u32 %v71, 2147483648
    %v218 = vxor.u32 %v72, 2147483648
    %v219 = vmul.f32 %v217, 1.442695
    %v220 = vpow.pop %v219
    %v221 = vmul.f32 %v218, 1.442695
    %v222 = vpow.pop %v221
    %v223 = vadd.f32 %v220, 1.0
    %v224 = vadd.f32 %v222, 1.0
    %v225 = vrcp.pop %v223
    %v226 = vmul.f32 %v223, %v225
    %v227 = vsub.f32 1.0, %v226
    %v228 = vmul.f32 %v225, %v227
    %v229 = vadd.f32 %v225, %v228
    %vm230 = vweird.f32 %v223
    %vm231 = vweird.f32 %v225
    %vm232 = vmor %vm230, %vm231
    %v233 = vsel %vm232, %v225, %v229
    %v234 = vand.u32 2147483647, %v223
    %vm235 = vcmp.eq.f32.partialorder %v234, 8.507059e+37
    %v236 = vand.u32 %v223, 2147483648
    %v237 = vor.u32 1.1754944e-38, %v236
    %v238 = vsel %vm235, %v237, %v233
    %v239 = vmul.f32 1.0, %v238
    %v240 = vrcp.pop %v224
    %v241 = vmul.f32 %v224, %v240
    %v242 = vsub.f32 1.0, %v241
    %v243 = vmul.f32 %v240, %v242
    %v244 = vadd.f32 %v240, %v243
    %vm245 = vweird.f32 %v224
    %vm246 = vweird.f32 %v240
    %vm247 = vmor %vm245, %vm246
    %v248 = vsel %vm247, %v240, %v244
    %v249 = vand.u32 2147483647, %v224
    %vm250 = vcmp.eq.f32.partialorder %v249, 8.507059e+37
    %v251 = vand.u32 %v224, 2147483648
    %v252 = vor.u32 1.1754944e-38, %v251
    %v253 = vsel %vm250, %v252, %v248
    %v254 = vmul.f32 1.0, %v253
    %v255 = vmul.f32 %v71, %v239
    %v256 = vmul.f32 %v72, %v254
    %v257 = vpack.c.bf16 %v256, %v255
    %v262 = vunpack.c.l.b16 %v66
    %v263 = vunpack.c.l.b16 %v67
    %v264 = vunpack.c.l.b16 %v68
    %v265 = vunpack.c.l.b16 %v69
    %v266 = vpack.c.b16 %v263, %v262
    %v267 = vpack.c.b16 %v265, %v264
    %v271 = vsel %vm73, %v257, 0
    %273 = vmatpush.bf16.msra.mxu0 0
    %274 = vmatpush.bf16.msra.mxu0 0
    %275 = vmatpush.bf16.msra.mxu0 0
    %276 = vmatpush.bf16.msra.mxu0 0
    %277 = vmatpush.bf16.msra.mxu0 0
    %278 = vmatpush.bf16.msra.mxu0 0
    %279 = vmatpush.bf16.msra.mxu0 %v267
    %280 = vmatpush.bf16.msra.mxu0 %v266
    %281 = vmatmul.bf16.gmra.mxu0 %v271
    %v282 = vpop.f32.mrf.mxu0
    %v283 = vadd.f32 0.0, %v282
    %v284 = vpop.f32.mrf.mxu0
    %v285 = vadd.f32 0.0, %v284
    %286 = vdwg.mxu0
    %v319 = vunpack.c.l.b16 %v34
    %v320 = vunpack.c.l.b16 %v35
    %v321 = vunpack.c.l.b16 %v36
    %v322 = vunpack.c.l.b16 %v37
    %v323 = vunpack.c.l.b16 %v38
    %v324 = vunpack.c.l.b16 %v39
    %v325 = vunpack.c.l.b16 %v40
    %v326 = vunpack.c.l.b16 %v41
    %v327 = vunpack.c.l.b16 %v42
    %v328 = vunpack.c.l.b16 %v43
    %v329 = vunpack.c.l.b16 %v44
    %v330 = vunpack.c.l.b16 %v45
    %v331 = vunpack.c.l.b16 %v46
    %v332 = vunpack.c.l.b16 %v47
    %v333 = vunpack.c.l.b16 %v48
    %v334 = vunpack.c.l.b16 %v49
    %v335 = vunpack.c.l.b16 %v50
    %v336 = vunpack.c.l.b16 %v51
    %v337 = vunpack.c.l.b16 %v52
    %v338 = vunpack.c.l.b16 %v53
    %v339 = vunpack.c.l.b16 %v54
    %v340 = vunpack.c.l.b16 %v55
    %v341 = vunpack.c.l.b16 %v56
    %v342 = vunpack.c.l.b16 %v57
    %v343 = vunpack.c.l.b16 %v58
    %v344 = vunpack.c.l.b16 %v59
    %v345 = vunpack.c.l.b16 %v60
    %v346 = vunpack.c.l.b16 %v61
    %v347 = vunpack.c.l.b16 %v62
    %v348 = vunpack.c.l.b16 %v63
    %v349 = vunpack.c.l.b16 %v64
    %v350 = vunpack.c.l.b16 %v65
    %v351 = vpack.c.b16 %v320, %v319
    %v352 = vpack.c.b16 %v322, %v321
    %v353 = vpack.c.b16 %v324, %v323
    %v354 = vpack.c.b16 %v326, %v325
    %v355 = vpack.c.b16 %v328, %v327
    %v356 = vpack.c.b16 %v330, %v329
    %v357 = vpack.c.b16 %v332, %v331
    %v358 = vpack.c.b16 %v334, %v333
    %v359 = vpack.c.b16 %v336, %v335
    %v360 = vpack.c.b16 %v338, %v337
    %v361 = vpack.c.b16 %v340, %v339
    %v362 = vpack.c.b16 %v342, %v341
    %v363 = vpack.c.b16 %v344, %v343
    %v364 = vpack.c.b16 %v346, %v345
    %v365 = vpack.c.b16 %v348, %v347
    %v366 = vpack.c.b16 %v350, %v349
    %383 = vmatpush.bf16.msra.mxu0 %v358
    %384 = vmatpush.bf16.msra.mxu0 %v357
    %385 = vmatpush.bf16.msra.mxu0 %v356
    %386 = vmatpush.bf16.msra.mxu0 %v355
    %387 = vmatpush.bf16.msra.mxu0 %v354
    %388 = vmatpush.bf16.msra.mxu0 %v353
    %389 = vmatpush.bf16.msra.mxu0 %v352
    %390 = vmatpush.bf16.msra.mxu0 %v351
    %391 = vmatmul.bf16.gmra.mxu0 %v215
    %v392 = vpop.f32.mrf.mxu0
    %v393 = vadd.f32 %v283, %v392
    %v394 = vpop.f32.mrf.mxu0
    %v395 = vadd.f32 %v285, %v394
    %396 = vdwg.mxu0
    %397 = vmatpush.bf16.msra.mxu0 %v366
    %398 = vmatpush.bf16.msra.mxu0 %v365
    %399 = vmatpush.bf16.msra.mxu0 %v364
    %400 = vmatpush.bf16.msra.mxu0 %v363
    %401 = vmatpush.bf16.msra.mxu0 %v362
    %402 = vmatpush.bf16.msra.mxu0 %v361
    %403 = vmatpush.bf16.msra.mxu0 %v360
    %404 = vmatpush.bf16.msra.mxu0 %v359
    %405 = vmatmul.bf16.gmra.mxu0 %v216
    %v406 = vpop.f32.mrf.mxu0
    %v407 = vadd.f32 %v393, %v406
    %v408 = vpop.f32.mrf.mxu0
    %v409 = vadd.f32 %v395, %v408
    %410 = vdwg.mxu0
    %v412 = vperm.slane %v70, 0
    %v414 = vadd.f32 %v407, %v412
    %v415 = vadd.f32 %v409, %v412
    %vm416 = vcmask 523264
    %417 = vst.msk [vmem:[#allocation2] sm:$0xff] %vm416, %v414
    %418 = vst.msk [vmem:[#allocation2 + $0x8] sm:$0xff] %vm416, %v415
    // Predicated region
    $region30: #{tpu_custom_call.1} parent=1 // pred_check
      _
    $region31: #{tpu_custom_call.1} parent=1 // pred_check_branch
      %420 = sbr.rel (0) target = $region33
    $region32: #{tpu_custom_call.1} parent=1 // pred_region
      %422 = vsyncadd [#allocation3], 0
      %s423 = sshll.u32 [#allocation2], 4
      %s424 = int_to_ptr.vmem [resolvable:$true] %s423
      %s425 = sshll.u32 %s7, 4
      %s426 = int_to_ptr.hbm [resolvable:$true] %s425
      %431 = dma.vmem_to_hbm [thread:$0]  %s424, 256, %s426, [#allocation3], 128, 128, 8
    $region33: #{tpu_custom_call.1} parent=1 // pred_fallthru
      _
    // Predicated region
    $region34: #{tpu_custom_call.1} parent=1 // pred_check
      _
    $region35: #{tpu_custom_call.1} parent=1 // pred_check_branch
      %433 = sbr.rel (0) target = $region37
    $region36: #{tpu_custom_call.1} parent=1 // pred_region
      %435 = dma.done [#allocation3], 256
    $region37: #{tpu_custom_call.1} parent=1 // pred_fallthru
      _
    %436 = vsyncpa [#allocation3], 1

</llo_original>
